<compile_context>
chip_gen: v7x
topology: tpu7x:2x2x1
jax: 0.10.0
libtpu: 0.0.40
codegen_flags: <defaults>
</compile_context>

<pallas_src>
import functools

import jax
import jax.numpy as jnp
from jax.experimental import pallas as pl
from jax.experimental.pallas import tpu as pltpu


_LANE = 128
_ACC_W = 4 * _LANE          # 512: accumulator lane width (4 vregs of add ILP)
_MAX_CHUNKS = 64            # cap on the static unrolled chunk loop (code size)
_DEFAULT_VMEM_CAP = 64 * 1024 * 1024   # conservative fallback (v7x per-TC size)


def _round_up(a, b):
    return -(-a // b) * b


def _device_vmem_bytes():
    """Physical VMEM of the attached TPU (64 MiB/TC on v7x, 128 MiB on v5e/v6e)."""
    try:
        cap = int(pltpu.get_tpu_info().vmem_capacity_bytes)
        if cap > 0:
            return cap
    except Exception:
        pass
    return _DEFAULT_VMEM_CAP  # safe on every generation


def _choose_tiles(rows, hw, itemsize, vmem_budget_bytes=None):
    """Pick (row_tile, col_tile, single_block, vmem_cap) from the device VMEM."""
    # Sub-32-bit dtypes pack along sublanes: 8 rows f32, 16 bf16, 32 int8/fp8.
    sublane = max(8, 32 // max(itemsize, 1))
    vmem_cap = _device_vmem_bytes()
    if vmem_budget_bytes is None:
        # Total budget: ~70% of the part (leave headroom for compiler scratch),
        # capped at 48 MiB -- larger buys nothing once per-step overhead is <5%.
        vmem_budget_bytes = min(int(vmem_cap * 0.70), 48 * 1024 * 1024)

    # Cap the row tile so the "parallel" row axis has >= 2 blocks whenever
    # possible (lets v7x shard the grid across its two TensorCores).
    max_row_tile = _round_up(rows, sublane)
    if rows >= 2 * sublane:
        max_row_tile = _round_up(-(-rows // 2), sublane)

    # (row_tile, 1) output block is lane-padded to 128 in VMEM, double-buffered.
    out_bytes_per_row = 2 * _LANE * itemsize

    # --- Fast path: whole H*W per block (fully contiguous DMAs, single k). ---
    single_bytes_per_row = 2 * hw * itemsize + out_bytes_per_row
    if sublane * single_bytes_per_row <= vmem_budget_bytes:
        row_tile = (vmem_budget_bytes // single_bytes_per_row) // sublane * sublane
        row_tile = max(sublane, min(row_tile, max_row_tile))
        return row_tile, hw, True, vmem_cap

    # --- Fallback: tile the H*W axis with large lane-dense chunks. ---
    col_budget_elems = vmem_budget_bytes // (2 * itemsize * sublane)
    col_tile = max(_ACC_W, col_budget_elems // _ACC_W * _ACC_W)
    col_tile = min(col_tile, _ACC_W * _MAX_CHUNKS)
    if hw >= _ACC_W:
        col_tile = min(col_tile, hw // _ACC_W * _ACC_W)
    bytes_per_row = 2 * col_tile * itemsize + _ACC_W * 4 + out_bytes_per_row
    row_tile = (vmem_budget_bytes // bytes_per_row) // sublane * sublane
    row_tile = max(sublane, min(row_tile, max_row_tile))
    return row_tile, col_tile, False, vmem_cap


def _gap_single_block_kernel(x_ref, o_ref, *, inv_hw):
    """Whole H*W in one block: sum the lane-dense axis once, scale, store."""
    s = jnp.sum(x_ref[...], axis=-1, dtype=jnp.float32, keepdims=True)
    o_ref[...] = (s * inv_hw).astype(o_ref.dtype)


def _gap_tiled_kernel(x_ref, o_ref, acc_ref, *, inv_hw, hw, col_tile, n_chunks,
                      mask_cols):
    """Tiled reduction: per-step pure load+add into a (row_tile, 512) f32 acc."""
    k = pl.program_id(1)          # reduction (H*W) axis -- last, "arbitrary"
    last = pl.num_programs(1) - 1

    @pl.when(k == 0)
    def _init():
        acc_ref[...] = jnp.zeros_like(acc_ref)

    def accumulate(masked):
        # Static unrolled loop over lane-aligned _ACC_W-wide chunks.  The hot
        # loop is vector loads + f32 adds only: no cross-lane reduce and no
        # 1-lane masked store per grid step (those happen once, in finalize).
        for j in range(n_chunks):
            xj = x_ref[:, j * _ACC_W:(j + 1) * _ACC_W]
            if masked:
                col = (k * col_tile + j * _ACC_W
                       + jax.lax.broadcasted_iota(jnp.int32, xj.shape, 1))
                xj = jnp.where(col < hw, xj, jnp.zeros_like(xj))
            acc_ref[...] += xj.astype(jnp.float32)

    if mask_cols:
        # The column mask only matters on the final (padded) block; gate it so
        # every other step is a plain load+add.
        @pl.when(k != last)
        def _plain():
            accumulate(False)

        @pl.when(k == last)
        def _masked():
            accumulate(True)
    else:
        accumulate(False)

    @pl.when(k == last)
    def _finalize():
        s = jnp.sum(acc_ref[...], axis=-1, keepdims=True)  # single XLU reduce
        o_ref[...] = (s * inv_hw).astype(o_ref.dtype)      # scale by true 1/(H*W)


def global_pooling_2d(x, *, vmem_budget_bytes=None):
    """x: (N, C, H, W) -> (N, C), mean over H*W. Matches GlobalPooling2D.forward.

    vmem_budget_bytes is an internal knob (used by the tests to force the
    tiled-reduction path); leave it as None for production use.
    """
    n, c, h, w = x.shape
    rows, hw = n * c, h * w
    x2d = x.reshape(rows, hw)

    itemsize = jnp.dtype(x.dtype).itemsize
    row_tile, col_tile, single, vmem_cap = _choose_tiles(
        rows, hw, itemsize, vmem_budget_bytes)
    inv_hw = 1.0 / float(hw)

    # Explicit scoped-VMEM limit sized from the device: lifts v5e/v6e past
    # their 16/32 MiB defaults while leaving ~15% headroom on v7x's 64 MiB.
    vmem_limit = int(min(vmem_cap * 0.85, 112 * 1024 * 1024))

    if single:
        grid = (pl.cdiv(rows, row_tile),)
        kernel = functools.partial(_gap_single_block_kernel, inv_hw=inv_hw)
        out = pl.pallas_call(
            kernel,
            out_shape=jax.ShapeDtypeStruct((rows, 1), x.dtype),
            grid_spec=pltpu.PrefetchScalarGridSpec(
                num_scalar_prefetch=0,
                grid=grid,
                in_specs=[pl.BlockSpec((row_tile, hw), lambda i: (i, 0))],
                out_specs=pl.BlockSpec((row_tile, 1), lambda i: (i, 0)),
            ),
            compiler_params=pltpu.CompilerParams(
                dimension_semantics=("parallel",),
                vmem_limit_bytes=vmem_limit,
            ),
        )(x2d)
    else:
        grid = (pl.cdiv(rows, row_tile), pl.cdiv(hw, col_tile))
        mask_cols = (hw % col_tile) != 0
        kernel = functools.partial(
            _gap_tiled_kernel,
            inv_hw=inv_hw,
            hw=hw,
            col_tile=col_tile,
            n_chunks=col_tile // _ACC_W,
            mask_cols=mask_cols,
        )
        out = pl.pallas_call(
            kernel,
            out_shape=jax.ShapeDtypeStruct((rows, 1), x.dtype),
            grid_spec=pltpu.PrefetchScalarGridSpec(
                num_scalar_prefetch=0,
                grid=grid,
                in_specs=[pl.BlockSpec((row_tile, col_tile), lambda i, k: (i, k))],
                # Output block resident across k; written only in the finalize.
                out_specs=pl.BlockSpec((row_tile, 1), lambda i, k: (i, 0)),
                scratch_shapes=[pltpu.VMEM((row_tile, _ACC_W), jnp.float32)],
            ),
            compiler_params=pltpu.CompilerParams(
                dimension_semantics=("parallel", "arbitrary"),
                vmem_limit_bytes=vmem_limit,
            ),
        )(x2d)

    return out.reshape(n, c)


def _reference(x):
    return jnp.mean(x.reshape(x.shape[0], x.shape[1], -1), axis=2)


if __name__ == "__main__":
    key = jax.random.PRNGKey(0)

    # 1) Small shape consistent with the module: batch=2, channels=4, 16x16.
    x = jax.random.normal(key, (2, 4, 16, 16), dtype=jnp.float32)
    y = global_pooling_2d(x)
    jax.block_until_ready(y)
    assert y.shape == (2, 4), y.shape
    assert jnp.allclose(y, _reference(x), atol=1e-5, rtol=1e-5), "mismatch (single-block)"

    # 2) Non-128-multiple H*W on the fast (single-block) path.
    x2 = jax.random.normal(jax.random.PRNGKey(0), (2, 4, 48, 60), dtype=jnp.float32)
    y2 = global_pooling_2d(x2)
    jax.block_until_ready(y2)
    assert jnp.allclose(y2, _reference(x2), atol=1e-5, rtol=1e-5), "mismatch (single, ragged H*W)"

    # 3) Force the tiled-reduction fallback (init / plain / masked / finalize)
    #    by shrinking the internal VMEM budget; H*W=2880 is not a multiple of
    #    the resulting col_tile, so the gated column mask is exercised.
    y2t = global_pooling_2d(x2, vmem_budget_bytes=128 * 1024)
    jax.block_until_ready(y2t)
    assert jnp.allclose(y2t, _reference(x2), atol=1e-5, rtol=1e-5), "mismatch (tiled reduction)"

    # 4) Enough rows that the "parallel" row axis gets >= 2 blocks.
    x3 = jax.random.normal(jax.random.PRNGKey(0), (2, 64, 16, 16), dtype=jnp.float32)
    y3 = global_pooling_2d(x3)
    jax.block_until_ready(y3)
    assert y3.shape == (2, 64), y3.shape
    assert jnp.allclose(y3, _reference(x3), atol=1e-5, rtol=1e-5), "mismatch (multi row-block)"

    print("KERNEL_OK")
</pallas_src>

<mosaic_0001>
module attributes {stable_mosaic.version = 11 : i64} {
  func.func @_gap_single_block_kernel(%arg0: i32, %arg1: memref<8x256xf32, #tpu.memory_space<vmem>>, %arg2: memref<8x1xf32, #tpu.memory_space<vmem>>) attributes {dimension_semantics = [#tpu.dimension_semantics<parallel>], iteration_bounds = array<i64: 1>, scalar_prefetch = 0 : i64, scratch_operands = 0 : i64, tpu.core_type = #tpu.core_type<tc>, window_params = [{transform_indices = @transform_0, window_bounds = array<i64: 8, 256>}, {transform_indices = @transform_1, window_bounds = array<i64: 8, 1>}]} {
    %c0 = arith.constant 0 : index
    %c0_0 = arith.constant 0 : index
    %0 = vector.load %arg1[%c0, %c0_0] : memref<8x256xf32, #tpu.memory_space<vmem>>, vector<8x256xf32>
    %cst = arith.constant dense<0.000000e+00> : vector<8xf32>
    %1 = vector.multi_reduction <add>, %0, %cst [1] : vector<8x256xf32> to vector<8xf32>
    %2 = vector.shape_cast %1 : vector<8xf32> to vector<8x1xf32>
    %cst_1 = arith.constant 3.906250e-03 : f32
    %3 = vector.broadcast %cst_1 : f32 to vector<8x1xf32>
    %4 = arith.mulf %2, %3 : vector<8x1xf32>
    %c0_2 = arith.constant 0 : index
    %c0_3 = arith.constant 0 : index
    %5 = vector.load %arg2[%c0_2, %c0_3] : memref<8x1xf32, #tpu.memory_space<vmem>>, vector<8x1xf32>
    tpu.vector_store %arg2[%c0_2, %c0_3], %4 {strides = array<i32>} : memref<8x1xf32, #tpu.memory_space<vmem>>, vector<8x1xf32>,
    return
  }
  func.func @transform_0(%arg0: i32) -> (i32, i32) {
    %c0_i32 = arith.constant 0 : i32
    %c0_i32_0 = arith.constant 0 : i32
    return %arg0, %c0_i32 : i32, i32
  }
  func.func @transform_1(%arg0: i32) -> (i32, i32) {
    %c0_i32 = arith.constant 0 : i32
    %c0_i32_0 = arith.constant 0 : i32
    return %arg0, %c0_i32 : i32, i32
  }
}

</mosaic_0001>

<llo_original>
// kernel: tpu_custom_call.1
$region0: #{tpu_custom_call.1}
  #allocation0 [shape = 'u32[]', space=smem, size = 0x4, offset = 0x4, fixed_abs, tag = 'smem constant byte address 0x4 - core index']
  #allocation1 [shape = 'u32[144,128]{1,0:T(1,128)}', space=vmem, size = 0x12000, scoped, tag = 'internal scratch']
  %s0 = inlined_call_operand.hbm [shape: f32[8,256], index: 0, kind: input, shape index: {}]
  %s1 = inlined_call_operand.vmem [shape: f32[8,1], index: 1, kind: output, shape index: {}]
  %s2 = sld [smem:[#allocation0]]
  $region18: #{tpu_custom_call.1} parent=0
    _
  %s4 = ssub.s32 1, %s2
  %s5 = scalar_select 0, %s4, %s2
  $region1: #{tpu_custom_call.1} parent=0
    #allocation2 [shape = 'u8[8192]{0}', space=vmem, size = 0x2000, scoped, tag = 'input window, operand 0, single buffered']
    #allocation3 [shape = 's32[1]{0}', space=sflag, size = 0x4, scoped, tag = 'scoped memory for tpu_custom_call.1']
    %6 = vsyncpa [#allocation3], 0
    // Predicated region
    $region2: #{tpu_custom_call.1} parent=1 // pred_check
      _
    $region3: #{tpu_custom_call.1} parent=1 // pred_check_branch
      %8 = sbr.rel (0) target = $region5
    $region4: #{tpu_custom_call.1} parent=1 // pred_region
      %s10 = ssub.s32 256, 256
      %11 = vsyncadd [#allocation3], %s10
      %s13 = sshll.u32 [#allocation2], 4
      %s14 = int_to_ptr.vmem [resolvable:$true] %s13
      %16 = dma.hbm_to_vmem [thread:$0]  %s0, 256, %s14, [#allocation3]
    $region5: #{tpu_custom_call.1} parent=1 // pred_fallthru
      _
    // Predicated region
    $region6: #{tpu_custom_call.1} parent=1 // pred_check
      _
    $region7: #{tpu_custom_call.1} parent=1 // pred_check_branch
      %18 = sbr.rel (0) target = $region9
    $region8: #{tpu_custom_call.1} parent=1 // pred_region
      %19 = dma.done [#allocation3], 256
    $region9: #{tpu_custom_call.1} parent=1 // pred_fallthru
      _
    %v20 = vld [vmem:[#allocation2] sm:$0xff]
    %v21 = vld [vmem:[#allocation2 + $0x8] sm:$0xff]
    %v22 = vadd.f32 %v20, %v21
    %23 = vadd.xlane.f32.xlu0 %v22
    %v24 = vpop.xlane.xlu0 %23
    %v25 = vmul.f32 %v24, 0.00390625
    %vm26 = vcmask 7168
    %27 = vst.msk [vmem:[%s1] sm:$0xff] %vm26, %v25
    // Predicated region
    $region10: #{tpu_custom_call.1} parent=1 // pred_check
      _
    $region11: #{tpu_custom_call.1} parent=1 // pred_check_branch
      %29 = sbr.rel (0) target = $region13
    $region12: #{tpu_custom_call.1} parent=1 // pred_region
      _
    $region13: #{tpu_custom_call.1} parent=1 // pred_fallthru
      _
    // Predicated region
    $region14: #{tpu_custom_call.1} parent=1 // pred_check
      _
    $region15: #{tpu_custom_call.1} parent=1 // pred_check_branch
      %31 = sbr.rel (0) target = $region17
    $region16: #{tpu_custom_call.1} parent=1 // pred_region
      _
    $region17: #{tpu_custom_call.1} parent=1 // pred_fallthru
      _
    %32 = vsyncpa [#allocation3], 1

</llo_original>
